<compile_context>
chip_gen: v7x
topology: tpu7x:2x2x1
jax: 0.10.0
libtpu: 0.0.40
codegen_flags: <defaults>
</compile_context>

<pallas_src>
import functools

import jax
import jax.numpy as jnp
from jax.experimental import pallas as pl
from jax.experimental.pallas import tpu as pltpu


def _fuse_kernel(x_ref, w_ref, b_ref, o_ref):
    """One (tm, tn) output tile.

    o_ref's index_map ignores the K grid axis, so the output block stays
    resident in VMEM across K and doubles as the f32 accumulator.
    """
    k = pl.program_id(2)

    # Fused ReLU on the VPU in f32, then cast to the MXU matmul dtype
    # (bf16 by default; the wrapper sets it via W's dtype).
    x = jnp.maximum(x_ref[...], 0.0).astype(w_ref.dtype)

    # (tm, tk) @ (tk, tn) on the MXU with f32 accumulation.
    partial = jnp.dot(x, w_ref[...], preferred_element_type=jnp.float32)

    @pl.when(k == 0)
    def _():
        o_ref[...] = partial

    @pl.when(k != 0)
    def _():
        o_ref[...] += partial

    @pl.when(k == pl.num_programs(2) - 1)
    def _():
        # Bias broadcast-add in f32, once, at the final K step.
        o_ref[...] += b_ref[...]


def _round_up(v: int, m: int) -> int:
    return ((v + m - 1) // m) * m


@functools.partial(jax.jit, static_argnames=("tm", "tn", "tk", "use_bf16"))
def fuse_model_sum_forward(x, w, b, *, tm=None, tn=None, tk=None, use_bf16=True):
    """y = relu(x) @ w.T + b (nn.Linear semantics), fused in one Pallas kernel.

    x: [B, F_in]      float32
    w: [F_out, F_in]  float32 (PyTorch nn.Linear weight layout: [out, in])
    b: [F_out]        float32
    """
    B, F_in = x.shape
    F_out, F_in_w = w.shape
    assert F_in == F_in_w and b.shape == (F_out,)

    # ---- Tile selection --------------------------------------------------
    b8 = _round_up(B, 8)          # sublane-aligned batch
    fo128 = _round_up(F_out, 128)  # lane-aligned out-features
    fi128 = _round_up(F_in, 128)   # lane-aligned in-features

    if tm is None:
        tm = min(b8, 512)
    if tn is None:
        tn = min(fo128, 512)
        # v7x megacore: with a single M block, make sure the 'parallel' N axis
        # has >= 2 blocks so both TensorCores get work.
        if b8 <= tm and fo128 >= 256 and fo128 // tn < 2:
            tn = max(128, (fo128 // 2 // 128) * 128)
    if tk is None:
        tk = min(fi128, 1024)

    if tm <= 0 or tm % 8 != 0:
        raise ValueError(f"tm must be a positive multiple of 8, got {tm}")
    if tn <= 0 or tn % 128 != 0:
        raise ValueError(f"tn must be a positive multiple of 128, got {tn}")
    if tk <= 0 or tk % 128 != 0:
        raise ValueError(f"tk must be a positive multiple of 128, got {tk}")

    # ---- Padding: every dim padded to an exact tile multiple --------------
    # Zero padding is semantics-preserving: relu(0)=0, zero K-columns and zero
    # bias lanes contribute nothing; padded rows/cols are sliced off at the end.
    Bp = _round_up(B, tm)
    Fout_p = _round_up(F_out, tn)
    Fin_p = _round_up(F_in, tk)

    xp = x
    if (Bp, Fin_p) != (B, F_in):
        xp = jnp.pad(x, ((0, Bp - B), (0, Fin_p - F_in)))

    # One-time transpose to [in, out] (canonical MXU form, no per-tile XLU
    # transpose) + one-time bf16 cast (halves W HBM bytes).
    mm_dtype = jnp.bfloat16 if use_bf16 else x.dtype
    wt = w.T
    if (Fin_p, Fout_p) != (F_in, F_out):
        wt = jnp.pad(wt, ((0, Fin_p - F_in), (0, Fout_p - F_out)))
    wt = wt.astype(mm_dtype)

    bp = b if Fout_p == F_out else jnp.pad(b, (0, Fout_p - F_out))
    bp = bp.astype(jnp.float32).reshape(1, Fout_p)

    grid = (Bp // tm, Fout_p // tn, Fin_p // tk)

    # ---- VMEM budget: double-buffered x / W / bias / output ---------------
    w_item = 2 if use_bf16 else 4
    est = 2 * (tm * tk * 4 + tk * tn * w_item + tn * 4 + tm * tn * 4)
    # Cap at 48 MiB: plenty for these tiles, leaves headroom on v7x (64 MiB/TC),
    # far below v5e/v6e's 128 MiB physical VMEM.
    vmem_limit = int(min(max(2 * est, 32 * 1024 * 1024), 48 * 1024 * 1024))

    out_padded = pl.pallas_call(
        _fuse_kernel,
        out_shape=jax.ShapeDtypeStruct((Bp, Fout_p), jnp.float32),
        grid=grid,
        in_specs=[
            pl.BlockSpec((tm, tk), lambda i, j, k: (i, k)),   # x tile (f32)
            pl.BlockSpec((tk, tn), lambda i, j, k: (k, j)),   # W.T tile (bf16)
            pl.BlockSpec((1, tn), lambda i, j, k: (0, j)),    # bias, K-resident
        ],
        out_specs=pl.BlockSpec((tm, tn), lambda i, j, k: (i, j)),  # K-resident acc
        compiler_params=pltpu.CompilerParams(
            dimension_semantics=("parallel", "parallel", "arbitrary"),
            vmem_limit_bytes=vmem_limit,
        ),
    )(xp, wt, bp)

    return out_padded[:B, :F_out].astype(x.dtype)


if __name__ == "__main__":
    # Small shapes consistent with the module: output_shape (== hidden) = 32, batch = 2.
    # NOTE: at these toy shapes the kernel is pure launch overhead; the tiling /
    # padding machinery above is what makes it scale to real B / F.
    B, F = 2, 32

    key = jax.random.PRNGKey(0)
    kx, kw, kb = jax.random.split(key, 3)

    x = jax.random.normal(kx, (B, F), dtype=jnp.float32)
    # Deterministic synthetic parameters (nn.Linear(F, F) shapes: W [F, F], b [F]).
    bound = 1.0 / jnp.sqrt(jnp.float32(F))
    w = jax.random.uniform(kw, (F, F), dtype=jnp.float32, minval=-bound, maxval=bound)
    b = jax.random.uniform(kb, (F,), dtype=jnp.float32, minval=-bound, maxval=bound)

    y = fuse_model_sum_forward(x, w, b)
    y = jax.block_until_ready(y)

    # Reference check (plain JAX f32) to make sure semantics match nn.Linear(relu(x)).
    y_ref = jnp.maximum(x, 0.0) @ w.T + b
    assert y.shape == (B, F)
    # bf16 MXU path: tolerance loosened accordingly (f32 accumulation keeps it tight).
    assert jnp.allclose(y, y_ref, atol=2e-2, rtol=2e-2)

    # Also exercise the pure-f32 path for an exact-ish check.
    y_f32 = jax.block_until_ready(fuse_model_sum_forward(x, w, b, use_bf16=False))
    assert jnp.allclose(y_f32, y_ref, atol=1e-5, rtol=1e-5)

    print("KERNEL_OK")
</pallas_src>

<mosaic_0001>
module attributes {stable_mosaic.version = 11 : i64} {
  func.func @_fuse_kernel(%arg0: i32, %arg1: i32, %arg2: i32, %arg3: memref<8x128xf32, #tpu.memory_space<vmem>>, %arg4: memref<128x128xbf16, #tpu.memory_space<vmem>>, %arg5: memref<1x128xf32, #tpu.memory_space<vmem>>, %arg6: memref<8x128xf32, #tpu.memory_space<vmem>>) attributes {dimension_semantics = [#tpu.dimension_semantics<parallel>, #tpu.dimension_semantics<parallel>, #tpu.dimension_semantics<arbitrary>], iteration_bounds = array<i64: 1, 1, 1>, scalar_prefetch = 0 : i64, scratch_operands = 0 : i64, tpu.core_type = #tpu.core_type<tc>, window_params = [{transform_indices = @transform_0, window_bounds = array<i64: 8, 128>}, {transform_indices = @transform_1, window_bounds = array<i64: 128, 128>}, {transform_indices = @transform_2, window_bounds = array<i64: 1, 128>}, {transform_indices = @transform_3, window_bounds = array<i64: 8, 128>}]} {
    %c0 = arith.constant 0 : index
    %c0_0 = arith.constant 0 : index
    %0 = vector.load %arg3[%c0, %c0_0] : memref<8x128xf32, #tpu.memory_space<vmem>>, vector<8x128xf32>
    %cst = arith.constant 0.000000e+00 : f32
    %1 = vector.broadcast %cst : f32 to vector<8x128xf32>
    %2 = arith.maximumf %0, %1 : vector<8x128xf32>
    %3 = arith.truncf %2 : vector<8x128xf32> to vector<8x128xbf16>
    %c0_1 = arith.constant 0 : index
    %c0_2 = arith.constant 0 : index
    %4 = vector.load %arg4[%c0_1, %c0_2] : memref<128x128xbf16, #tpu.memory_space<vmem>>, vector<128x128xbf16>
    %cst_3 = arith.constant dense<0.000000e+00> : vector<8x128xf32>
    %5 = tpu.matmul %3, %4, %cst_3 {dimension_numbers = #tpu.dot_dimension_numbers<[1], [0], [0], [1], [0, 0, 1, 1], [], []>} : vector<8x128xbf16>, vector<128x128xbf16>, vector<8x128xf32> -> vector<8x128xf32>
    %c0_i32 = arith.constant 0 : i32
    %6 = arith.cmpi eq, %arg2, %c0_i32 : i32
    %7 = arith.extui %6 : i1 to i32
    %c0_i32_4 = arith.constant 0 : i32
    %8 = arith.cmpi ne, %7, %c0_i32_4 : i32
    scf.if %8 {
      %c0_9 = arith.constant 0 : index
      %c0_10 = arith.constant 0 : index
      %15 = vector.load %arg6[%c0_9, %c0_10] : memref<8x128xf32, #tpu.memory_space<vmem>>, vector<8x128xf32>
      tpu.vector_store %arg6[%c0_9, %c0_10], %5 {strides = array<i32>} : memref<8x128xf32, #tpu.memory_space<vmem>>, vector<8x128xf32>,
    } else {
    }
    %c0_i32_5 = arith.constant 0 : i32
    %9 = arith.cmpi ne, %arg2, %c0_i32_5 : i32
    %10 = arith.extui %9 : i1 to i32
    %c0_i32_6 = arith.constant 0 : i32
    %11 = arith.cmpi ne, %10, %c0_i32_6 : i32
    scf.if %11 {
      %c0_9 = arith.constant 0 : index
      %c0_10 = arith.constant 0 : index
      %15 = vector.load %arg6[%c0_9, %c0_10] : memref<8x128xf32, #tpu.memory_space<vmem>>, vector<8x128xf32>
      %16 = arith.addf %15, %5 : vector<8x128xf32>
      %c0_11 = arith.constant 0 : index
      %c0_12 = arith.constant 0 : index
      %17 = vector.load %arg6[%c0_11, %c0_12] : memref<8x128xf32, #tpu.memory_space<vmem>>, vector<8x128xf32>
      tpu.vector_store %arg6[%c0_11, %c0_12], %16 {strides = array<i32>} : memref<8x128xf32, #tpu.memory_space<vmem>>, vector<8x128xf32>,
    } else {
    }
    %c0_i32_7 = arith.constant 0 : i32
    %12 = arith.cmpi eq, %arg2, %c0_i32_7 : i32
    %13 = arith.extui %12 : i1 to i32
    %c0_i32_8 = arith.constant 0 : i32
    %14 = arith.cmpi ne, %13, %c0_i32_8 : i32
    scf.if %14 {
      %c0_9 = arith.constant 0 : index
      %c0_10 = arith.constant 0 : index
      %15 = vector.load %arg6[%c0_9, %c0_10] : memref<8x128xf32, #tpu.memory_space<vmem>>, vector<8x128xf32>
      %c0_11 = arith.constant 0 : index
      %c0_12 = arith.constant 0 : index
      %16 = vector.load %arg5[%c0_11, %c0_12] : memref<1x128xf32, #tpu.memory_space<vmem>>, vector<1x128xf32>
      %17 = vector.broadcast %16 : vector<1x128xf32> to vector<8x128xf32>
      %18 = arith.addf %15, %17 : vector<8x128xf32>
      %c0_13 = arith.constant 0 : index
      %c0_14 = arith.constant 0 : index
      %19 = vector.load %arg6[%c0_13, %c0_14] : memref<8x128xf32, #tpu.memory_space<vmem>>, vector<8x128xf32>
      tpu.vector_store %arg6[%c0_13, %c0_14], %18 {strides = array<i32>} : memref<8x128xf32, #tpu.memory_space<vmem>>, vector<8x128xf32>,
    } else {
    }
    return
  }
  func.func @transform_0(%arg0: i32, %arg1: i32, %arg2: i32) -> (i32, i32) {
    %c0_i32 = arith.constant 0 : i32
    return %arg0, %arg2 : i32, i32
  }
  func.func @transform_1(%arg0: i32, %arg1: i32, %arg2: i32) -> (i32, i32) {
    %c0_i32 = arith.constant 0 : i32
    return %arg2, %arg1 : i32, i32
  }
  func.func @transform_2(%arg0: i32, %arg1: i32, %arg2: i32) -> (i32, i32) {
    %c0_i32 = arith.constant 0 : i32
    %c0_i32_0 = arith.constant 0 : i32
    return %c0_i32, %arg1 : i32, i32
  }
  func.func @transform_3(%arg0: i32, %arg1: i32, %arg2: i32) -> (i32, i32) {
    %c0_i32 = arith.constant 0 : i32
    return %arg0, %arg1 : i32, i32
  }
}

</mosaic_0001>

<llo_original>
// kernel: fuse_model_sum_forward.1
$region0: #{fuse_model_sum_forward.1}
  #allocation0 [shape = 'u32[]', space=smem, size = 0x4, offset = 0x4, fixed_abs, tag = 'smem constant byte address 0x4 - core index']
  #allocation1 [shape = 'u32[144,128]{1,0:T(1,128)}', space=vmem, size = 0x12000, scoped, tag = 'internal scratch']
  %s0 = inlined_call_operand.vmem [shape: f32[8,128], index: 0, kind: input, shape index: {}]
  %s1 = inlined_call_operand.vmem [shape: bf16[128,128], index: 1, kind: input, shape index: {}]
  %s2 = inlined_call_operand.vmem [shape: f32[1,128], index: 2, kind: input, shape index: {}]
  %s3 = inlined_call_operand.vmem [shape: f32[8,128], index: 3, kind: output, shape index: {}]
  %s4 = sld [smem:[#allocation0]]
  $region34: #{fuse_model_sum_forward.1} parent=0
    _
  %s6 = ssub.s32 1, %s4
  %s7 = scalar_select 0, %s6, %s4
  // Predicated region
  $region2: #{fuse_model_sum_forward.1} parent=0 // pred_check
    _
  $region3: #{fuse_model_sum_forward.1} parent=0 // pred_check_branch
    %9 = sbr.rel (0) target = $region5
  $region4: #{fuse_model_sum_forward.1} parent=0 // pred_region
    _
  $region5: #{fuse_model_sum_forward.1} parent=0 // pred_fallthru
    _
  // Predicated region
  $region6: #{fuse_model_sum_forward.1} parent=0 // pred_check
    _
  $region7: #{fuse_model_sum_forward.1} parent=0 // pred_check_branch
    %11 = sbr.rel (0) target = $region9
  $region8: #{fuse_model_sum_forward.1} parent=0 // pred_region
    _
  $region9: #{fuse_model_sum_forward.1} parent=0 // pred_fallthru
    _
  // Predicated region
  $region10: #{fuse_model_sum_forward.1} parent=0 // pred_check
    _
  $region11: #{fuse_model_sum_forward.1} parent=0 // pred_check_branch
    %13 = sbr.rel (0) target = $region13
  $region12: #{fuse_model_sum_forward.1} parent=0 // pred_region
    _
  $region13: #{fuse_model_sum_forward.1} parent=0 // pred_fallthru
    _
  %v15 = vld [vmem:[%s0] sm:$0xff]
  %v16 = vmax.f32 %v15, 0.0
  %v17 = vpack.c.bf16 %v16, %v16
  %v18 = vld [vmem:[%s1] sm:$0xf]
  %v19 = vld [vmem:[%s1 + $0x4] sm:$0xf]
  %v20 = vld [vmem:[%s1 + $0x8] sm:$0xf]
  %v21 = vld [vmem:[%s1 + $0xc] sm:$0xf]
  %v22 = vld [vmem:[%s1 + $0x10] sm:$0xf]
  %v23 = vld [vmem:[%s1 + $0x14] sm:$0xf]
  %v24 = vld [vmem:[%s1 + $0x18] sm:$0xf]
  %v25 = vld [vmem:[%s1 + $0x1c] sm:$0xf]
  %v26 = vld [vmem:[%s1 + $0x20] sm:$0xf]
  %v27 = vld [vmem:[%s1 + $0x24] sm:$0xf]
  %v28 = vld [vmem:[%s1 + $0x28] sm:$0xf]
  %v29 = vld [vmem:[%s1 + $0x2c] sm:$0xf]
  %v30 = vld [vmem:[%s1 + $0x30] sm:$0xf]
  %v31 = vld [vmem:[%s1 + $0x34] sm:$0xf]
  %v32 = vld [vmem:[%s1 + $0x38] sm:$0xf]
  %v33 = vld [vmem:[%s1 + $0x3c] sm:$0xf]
  %v50 = vunpack.c.l.b16 %v18
  %v51 = vunpack.c.l.b16 %v19
  %v52 = vunpack.c.l.b16 %v20
  %v53 = vunpack.c.l.b16 %v21
  %v54 = vunpack.c.l.b16 %v22
  %v55 = vunpack.c.l.b16 %v23
  %v56 = vunpack.c.l.b16 %v24
  %v57 = vunpack.c.l.b16 %v25
  %v58 = vunpack.c.l.b16 %v26
  %v59 = vunpack.c.l.b16 %v27
  %v60 = vunpack.c.l.b16 %v28
  %v61 = vunpack.c.l.b16 %v29
  %v62 = vunpack.c.l.b16 %v30
  %v63 = vunpack.c.l.b16 %v31
  %v64 = vunpack.c.l.b16 %v32
  %v65 = vunpack.c.l.b16 %v33
  %v66 = vpack.c.b16 %v51, %v50
  %v67 = vpack.c.b16 %v53, %v52
  %v68 = vpack.c.b16 %v55, %v54
  %v69 = vpack.c.b16 %v57, %v56
  %v70 = vpack.c.b16 %v59, %v58
  %v71 = vpack.c.b16 %v61, %v60
  %v72 = vpack.c.b16 %v63, %v62
  %v73 = vpack.c.b16 %v65, %v64
  %82 = vmatprep.subr.bf16.mxu0 0
  %83 = vmatpush1.bf16.msra.mxu0 %v66
  %84 = vmatprep.subr.bf16.mxu0 0
  %85 = vmatpush1.bf16.msra.mxu0 %v67
  %86 = vmatprep.subr.bf16.mxu0 0
  %87 = vmatpush1.bf16.msra.mxu0 %v68
  %88 = vmatprep.subr.bf16.mxu0 0
  %89 = vmatpush1.bf16.msra.mxu0 %v69
  %90 = vmatprep.subr.bf16.mxu0 0
  %91 = vmatpush1.bf16.msra.mxu0 %v70
  %92 = vmatprep.subr.bf16.mxu0 0
  %93 = vmatpush1.bf16.msra.mxu0 %v71
  %94 = vmatprep.subr.bf16.mxu0 0
  %95 = vmatpush1.bf16.msra.mxu0 %v72
  %96 = vmatprep.subr.bf16.mxu0 0
  %97 = vmatpush1.bf16.msra.mxu0 %v73
  %98 = vmatprep.subr.bf16.mxu0 0
  %99 = vmatpush1.bf16.msra.mxu0 0
  %100 = vmatprep.subr.bf16.mxu0 0
  %101 = vmatpush1.bf16.msra.mxu0 0
  %102 = vmatprep.subr.bf16.mxu0 0
  %103 = vmatpush1.bf16.msra.mxu0 0
  %104 = vmatprep.subr.bf16.mxu0 0
  %105 = vmatpush1.bf16.msra.mxu0 0
  %106 = vmatprep.subr.bf16.mxu0 0
  %107 = vmatpush1.bf16.msra.mxu0 0
  %108 = vmatprep.subr.bf16.mxu0 0
  %109 = vmatpush1.bf16.msra.mxu0 0
  %110 = vmatprep.subr.bf16.mxu0 0
  %111 = vmatpush1.bf16.msra.mxu0 0
  %112 = vmatprep.subr.bf16.mxu0 0
  %113 = vmatpush1.bf16.msra.mxu0 0
  %114 = vmatprep.mubr.bf16.mxu0 0
  %115 = vmatmul.mubr.bf16.gmra.mrb[0].mxu0 %v17
  %v116 = vpop.f32.mrb[0].mxu0
  %v117 = vadd.f32 0.0, %v116
  %v118 = vpop.f32.mrb[0].mxu0
  %v119 = vpop.f32.mrb[0].mxu0
  %v120 = vpop.f32.mrb[0].mxu0
  %121 = vdwg.mxu0
  %p122 = scmp.eq.s32.totalorder 0, 0
  // Predicated region
  $region14: #{fuse_model_sum_forward.1} parent=0 // pred_check
    %p123 = pneg %p122
  $region15: #{fuse_model_sum_forward.1} parent=0 // pred_check_branch
    %125 = sbr.rel (%p123) target = $region17
  $region16: #{fuse_model_sum_forward.1} parent=0 // pred_region
    %126 = vst [vmem:[%s3] sm:$0xff] %v117
  $region17: #{fuse_model_sum_forward.1} parent=0 // pred_fallthru
    _
  %p127 = scmp.ne.s32.totalorder 0, 0
  // Predicated region
  $region18: #{fuse_model_sum_forward.1} parent=0 // pred_check
    %p128 = pneg %p127
  $region19: #{fuse_model_sum_forward.1} parent=0 // pred_check_branch
    %130 = sbr.rel (%p128) target = $region21
  $region20: #{fuse_model_sum_forward.1} parent=0 // pred_region
    %v131 = vld [vmem:[%s3] sm:$0xff]
    %v132 = vadd.f32 %v131, %v117
    %133 = vst [vmem:[%s3] sm:$0xff] %v132
  $region21: #{fuse_model_sum_forward.1} parent=0 // pred_fallthru
    _
  // Predicated region
  $region22: #{fuse_model_sum_forward.1} parent=0 // pred_check
    %p134 = pneg %p122
  $region23: #{fuse_model_sum_forward.1} parent=0 // pred_check_branch
    %136 = sbr.rel (%p134) target = $region25
  $region24: #{fuse_model_sum_forward.1} parent=0 // pred_region
    %v137 = vld [vmem:[%s3] sm:$0xff]
    %v138 = vld [vmem:[%s2] sm:$0x1]
    %v140 = vlaneseq
    %v141 = vshrl.u32 %v140, 7
    %v142 = vsub.s32 0, %v141
    %v143 = vrot.slane %v138, %v142
    %v145 = vadd.f32 %v137, %v143
    %146 = vst [vmem:[%s3] sm:$0xff] %v145
  $region25: #{fuse_model_sum_forward.1} parent=0 // pred_fallthru
    _
  // Predicated region
  $region26: #{fuse_model_sum_forward.1} parent=0 // pred_check
    _
  $region27: #{fuse_model_sum_forward.1} parent=0 // pred_check_branch
    %148 = sbr.rel (0) target = $region29
  $region28: #{fuse_model_sum_forward.1} parent=0 // pred_region
    _
  $region29: #{fuse_model_sum_forward.1} parent=0 // pred_fallthru
    _
  // Predicated region
  $region30: #{fuse_model_sum_forward.1} parent=0 // pred_check
    _
  $region31: #{fuse_model_sum_forward.1} parent=0 // pred_check_branch
    %150 = sbr.rel (0) target = $region33
  $region32: #{fuse_model_sum_forward.1} parent=0 // pred_region
    _
  $region33: #{fuse_model_sum_forward.1} parent=0 // pred_fallthru
    _

</llo_original>
